<compile_context>
chip_gen: v7x
topology: tpu7x:2x2x1
jax: 0.10.0
libtpu: 0.0.40
codegen_flags: <defaults>
</compile_context>

<pallas_src>
import math
import jax
import jax.numpy as jnp
from jax.experimental import pallas as pl
from jax.experimental.pallas import tpu as pltpu


TB = 128  # batch tile: multiple of 16 (bf16 sublane packing), amortizes per-step overhead


def spike_decoder_kernel(x_ref, w1_ref, b1_ref, w2_ref, b2_ref, w3_ref, b3_ref, o_ref):
    # bf16 operands into the MXU, f32 accumulation; bias add and ReLU in f32.
    x = x_ref[...]                                                       # bf16 (TB, latent)
    h1 = jnp.dot(x, w1_ref[...], preferred_element_type=jnp.float32) + b1_ref[...]
    h1 = jnp.maximum(h1, 0.0)
    h2 = jnp.dot(h1.astype(jnp.bfloat16), w2_ref[...],
                 preferred_element_type=jnp.float32) + b2_ref[...]
    h2 = jnp.maximum(h2, 0.0)
    h3 = jnp.dot(h2.astype(jnp.bfloat16), w3_ref[...],
                 preferred_element_type=jnp.float32) + b3_ref[...]
    o_ref[...] = h3.astype(o_ref.dtype)


def spike_decoder_forward(x, params):
    """x: (..., latent_dim). Returns (prod(leading), n_neurons*n_fr_bins) float32,
    matching the PyTorch module's final reshape(-1, n_neurons*n_fr_bins)."""
    w1, b1 = params["w1"], params["b1"]
    w2, b2 = params["w2"], params["b2"]
    w3, b3 = params["w3"], params["b3"]
    latent_dim = w1.shape[0]
    out_dim = w3.shape[1]

    # Flatten leading dims (same as torch's reshape(-1, out_dim) after the MLP).
    x2 = x.reshape(-1, latent_dim)
    batch = x2.shape[0]

    # Pad batch up to a multiple of the tile; padded rows are sliced off afterwards.
    padded = pl.cdiv(batch, TB) * TB
    if padded != batch:
        x2 = jnp.pad(x2, ((0, padded - batch), (0, 0)))
    x_bf16 = x2.astype(jnp.bfloat16)

    grid = (padded // TB,)

    def const_spec(shape):
        # Full-array block, constant index map -> stays resident in VMEM across steps.
        return pl.BlockSpec(shape, lambda i: (0, 0))

    flops = 2 * padded * (latent_dim * 64 + 64 * 256 + 256 * out_dim)
    bytes_accessed = (
        x_bf16.size * 2
        + (w1.size + w2.size + w3.size) * 2
        + (b1.size + b2.size + b3.size) * 4
        + padded * out_dim * 4
    )

    out = pl.pallas_call(
        spike_decoder_kernel,
        out_shape=jax.ShapeDtypeStruct((padded, out_dim), jnp.float32),
        grid=grid,
        in_specs=[
            pl.BlockSpec((TB, latent_dim), lambda i: (i, 0)),
            const_spec(w1.shape), const_spec(b1.shape),
            const_spec(w2.shape), const_spec(b2.shape),
            const_spec(w3.shape), const_spec(b3.shape),
        ],
        out_specs=pl.BlockSpec((TB, out_dim), lambda i: (i, 0)),
        compiler_params=pltpu.CompilerParams(
            dimension_semantics=("parallel",),  # shard batch axis across v7x's 2 TCs
        ),
        cost_estimate=pl.CostEstimate(
            flops=flops, transcendentals=0, bytes_accessed=bytes_accessed),
    )(x_bf16, w1, b1, w2, b2, w3, b3)

    # TODO(synk): for very large n_neurons*n_fr_bins, add a K/N tiling grid axis and
    # single-buffer the constant weight specs to respect v7x's 64 MiB VMEM.
    return out[:batch]


def init_params(key, n_neurons, n_fr_bins, latent_dim=16):
    """Deterministic init mimicking PyTorch nn.Linear default (Kaiming-uniform-ish).
    Weights stored as (in_features, out_features) bf16; biases f32 shaped (1, out)."""
    dims = [(latent_dim, 64), (64, 256), (256, n_neurons * n_fr_bins)]
    params = {}
    for i, (fan_in, fan_out) in enumerate(dims, start=1):
        key, kw, kb = jax.random.split(key, 3)
        bound = 1.0 / math.sqrt(fan_in)
        w = jax.random.uniform(kw, (fan_in, fan_out), jnp.float32, -bound, bound)
        params[f"w{i}"] = w.astype(jnp.bfloat16)
        params[f"b{i}"] = jax.random.uniform(
            kb, (1, fan_out), jnp.float32, -bound, bound)
    return params


def reference_forward(x, params):
    """Pure-JAX f32 reference of the same decoder MLP."""
    latent_dim = params["w1"].shape[0]
    out_dim = params["w3"].shape[1]
    x2 = x.reshape(-1, latent_dim).astype(jnp.float32)
    h1 = jnp.maximum(x2 @ params["w1"].astype(jnp.float32) + params["b1"], 0.0)
    h2 = jnp.maximum(h1 @ params["w2"].astype(jnp.float32) + params["b2"], 0.0)
    y = h2 @ params["w3"].astype(jnp.float32) + params["b3"]
    return y.reshape(-1, out_dim)


if __name__ == "__main__":
    key = jax.random.PRNGKey(0)
    n_neurons = 32
    n_context_bins = 8   # unused by forward (matches the PyTorch module)
    n_fr_bins = 4        # output dim = 32*4 = 128 -> lane-dense store
    latent_dim = 16
    batch = 8

    kx, kp = jax.random.split(key)
    x = jax.random.normal(kx, (batch, latent_dim), jnp.float32)
    params = init_params(kp, n_neurons, n_fr_bins, latent_dim)

    out = spike_decoder_forward(x, params)
    out = jax.block_until_ready(out)

    ref = reference_forward(x, params)
    assert out.shape == (batch, n_neurons * n_fr_bins), out.shape
    # bf16 matmul operands (f32 accumulation) -> loosened tolerance vs f32 reference.
    assert jnp.allclose(out, ref, atol=5e-2, rtol=5e-2), "mismatch vs JAX reference"

    print("KERNEL_OK")
</pallas_src>

<mosaic_0001>
module attributes {stable_mosaic.version = 11 : i64} {
  func.func @spike_decoder_kernel(%arg0: i32, %arg1: memref<128x16xbf16, #tpu.memory_space<vmem>>, %arg2: memref<16x64xbf16, #tpu.memory_space<vmem>>, %arg3: memref<1x64xf32, #tpu.memory_space<vmem>>, %arg4: memref<64x256xbf16, #tpu.memory_space<vmem>>, %arg5: memref<1x256xf32, #tpu.memory_space<vmem>>, %arg6: memref<256x128xbf16, #tpu.memory_space<vmem>>, %arg7: memref<1x128xf32, #tpu.memory_space<vmem>>, %arg8: memref<128x128xf32, #tpu.memory_space<vmem>>) attributes {dimension_semantics = [#tpu.dimension_semantics<parallel>], iteration_bounds = array<i64: 1>, scalar_prefetch = 0 : i64, scratch_operands = 0 : i64, tpu.core_type = #tpu.core_type<tc>, window_params = [{transform_indices = @transform_0, window_bounds = array<i64: 128, 16>}, {pipeline_mode = #tpu.pipeline_mode<synchronous>, transform_indices = @transform_1, window_bounds = array<i64: 16, 64>}, {pipeline_mode = #tpu.pipeline_mode<synchronous>, transform_indices = @transform_2, window_bounds = array<i64: 1, 64>}, {pipeline_mode = #tpu.pipeline_mode<synchronous>, transform_indices = @transform_3, window_bounds = array<i64: 64, 256>}, {pipeline_mode = #tpu.pipeline_mode<synchronous>, transform_indices = @transform_4, window_bounds = array<i64: 1, 256>}, {pipeline_mode = #tpu.pipeline_mode<synchronous>, transform_indices = @transform_5, window_bounds = array<i64: 256, 128>}, {pipeline_mode = #tpu.pipeline_mode<synchronous>, transform_indices = @transform_6, window_bounds = array<i64: 1, 128>}, {transform_indices = @transform_7, window_bounds = array<i64: 128, 128>}]} {
    %c0 = arith.constant 0 : index
    %c0_0 = arith.constant 0 : index
    %0 = vector.load %arg1[%c0, %c0_0] : memref<128x16xbf16, #tpu.memory_space<vmem>>, vector<128x16xbf16>
    %c0_1 = arith.constant 0 : index
    %c0_2 = arith.constant 0 : index
    %1 = vector.load %arg2[%c0_1, %c0_2] : memref<16x64xbf16, #tpu.memory_space<vmem>>, vector<16x64xbf16>
    %cst = arith.constant dense<0.000000e+00> : vector<128x64xf32>
    %2 = tpu.matmul %0, %1, %cst {dimension_numbers = #tpu.dot_dimension_numbers<[1], [0], [0], [1], [0, 0, 1, 1], [], []>} : vector<128x16xbf16>, vector<16x64xbf16>, vector<128x64xf32> -> vector<128x64xf32>
    %c0_3 = arith.constant 0 : index
    %c0_4 = arith.constant 0 : index
    %3 = vector.load %arg3[%c0_3, %c0_4] : memref<1x64xf32, #tpu.memory_space<vmem>>, vector<1x64xf32>
    %4 = vector.broadcast %3 : vector<1x64xf32> to vector<128x64xf32>
    %5 = arith.addf %2, %4 : vector<128x64xf32>
    %cst_5 = arith.constant 0.000000e+00 : f32
    %6 = vector.broadcast %cst_5 : f32 to vector<128x64xf32>
    %7 = arith.maximumf %5, %6 : vector<128x64xf32>
    %8 = arith.truncf %7 : vector<128x64xf32> to vector<128x64xbf16>
    %c0_6 = arith.constant 0 : index
    %c0_7 = arith.constant 0 : index
    %9 = vector.load %arg4[%c0_6, %c0_7] : memref<64x256xbf16, #tpu.memory_space<vmem>>, vector<64x256xbf16>
    %cst_8 = arith.constant dense<0.000000e+00> : vector<128x256xf32>
    %10 = tpu.matmul %8, %9, %cst_8 {dimension_numbers = #tpu.dot_dimension_numbers<[1], [0], [0], [1], [0, 0, 1, 1], [], []>} : vector<128x64xbf16>, vector<64x256xbf16>, vector<128x256xf32> -> vector<128x256xf32>
    %c0_9 = arith.constant 0 : index
    %c0_10 = arith.constant 0 : index
    %11 = vector.load %arg5[%c0_9, %c0_10] : memref<1x256xf32, #tpu.memory_space<vmem>>, vector<1x256xf32>
    %12 = vector.broadcast %11 : vector<1x256xf32> to vector<128x256xf32>
    %13 = arith.addf %10, %12 : vector<128x256xf32>
    %cst_11 = arith.constant 0.000000e+00 : f32
    %14 = vector.broadcast %cst_11 : f32 to vector<128x256xf32>
    %15 = arith.maximumf %13, %14 : vector<128x256xf32>
    %16 = arith.truncf %15 : vector<128x256xf32> to vector<128x256xbf16>
    %c0_12 = arith.constant 0 : index
    %c0_13 = arith.constant 0 : index
    %17 = vector.load %arg6[%c0_12, %c0_13] : memref<256x128xbf16, #tpu.memory_space<vmem>>, vector<256x128xbf16>
    %cst_14 = arith.constant dense<0.000000e+00> : vector<128x128xf32>
    %18 = tpu.matmul %16, %17, %cst_14 {dimension_numbers = #tpu.dot_dimension_numbers<[1], [0], [0], [1], [0, 0, 1, 1], [], []>} : vector<128x256xbf16>, vector<256x128xbf16>, vector<128x128xf32> -> vector<128x128xf32>
    %c0_15 = arith.constant 0 : index
    %c0_16 = arith.constant 0 : index
    %19 = vector.load %arg7[%c0_15, %c0_16] : memref<1x128xf32, #tpu.memory_space<vmem>>, vector<1x128xf32>
    %20 = vector.broadcast %19 : vector<1x128xf32> to vector<128x128xf32>
    %21 = arith.addf %18, %20 : vector<128x128xf32>
    %c0_17 = arith.constant 0 : index
    %c0_18 = arith.constant 0 : index
    %22 = vector.load %arg8[%c0_17, %c0_18] : memref<128x128xf32, #tpu.memory_space<vmem>>, vector<128x128xf32>
    tpu.vector_store %arg8[%c0_17, %c0_18], %21 {strides = array<i32>} : memref<128x128xf32, #tpu.memory_space<vmem>>, vector<128x128xf32>,
    return
  }
  func.func @transform_0(%arg0: i32) -> (i32, i32) {
    %c0_i32 = arith.constant 0 : i32
    %c0_i32_0 = arith.constant 0 : i32
    return %arg0, %c0_i32 : i32, i32
  }
  func.func @transform_1(%arg0: i32) -> (i32, i32) {
    %c0_i32 = arith.constant 0 : i32
    %c0_i32_0 = arith.constant 0 : i32
    %c0_i32_1 = arith.constant 0 : i32
    return %c0_i32, %c0_i32_0 : i32, i32
  }
  func.func @transform_2(%arg0: i32) -> (i32, i32) {
    %c0_i32 = arith.constant 0 : i32
    %c0_i32_0 = arith.constant 0 : i32
    %c0_i32_1 = arith.constant 0 : i32
    return %c0_i32, %c0_i32_0 : i32, i32
  }
  func.func @transform_3(%arg0: i32) -> (i32, i32) {
    %c0_i32 = arith.constant 0 : i32
    %c0_i32_0 = arith.constant 0 : i32
    %c0_i32_1 = arith.constant 0 : i32
    return %c0_i32, %c0_i32_0 : i32, i32
  }
  func.func @transform_4(%arg0: i32) -> (i32, i32) {
    %c0_i32 = arith.constant 0 : i32
    %c0_i32_0 = arith.constant 0 : i32
    %c0_i32_1 = arith.constant 0 : i32
    return %c0_i32, %c0_i32_0 : i32, i32
  }
  func.func @transform_5(%arg0: i32) -> (i32, i32) {
    %c0_i32 = arith.constant 0 : i32
    %c0_i32_0 = arith.constant 0 : i32
    %c0_i32_1 = arith.constant 0 : i32
    return %c0_i32, %c0_i32_0 : i32, i32
  }
  func.func @transform_6(%arg0: i32) -> (i32, i32) {
    %c0_i32 = arith.constant 0 : i32
    %c0_i32_0 = arith.constant 0 : i32
    %c0_i32_1 = arith.constant 0 : i32
    return %c0_i32, %c0_i32_0 : i32, i32
  }
  func.func @transform_7(%arg0: i32) -> (i32, i32) {
    %c0_i32 = arith.constant 0 : i32
    %c0_i32_0 = arith.constant 0 : i32
    return %arg0, %c0_i32 : i32, i32
  }
}

</mosaic_0001>

<llo_original>
// kernel: tpu_custom_call.1
$region0: #{tpu_custom_call.1}
  #allocation0 [shape = 'u32[]', space=smem, size = 0x4, offset = 0x4, fixed_abs, tag = 'smem constant byte address 0x4 - core index']
  #allocation1 [shape = 'u32[144,128]{1,0:T(1,128)}', space=vmem, size = 0x12000, scoped, tag = 'internal scratch']
  %s0 = inlined_call_operand.vmem [shape: bf16[128,16], index: 0, kind: input, shape index: {}]
  %s1 = inlined_call_operand.vmem [shape: bf16[16,64], index: 1, kind: input, shape index: {}]
  %s2 = inlined_call_operand.vmem [shape: f32[1,64], index: 2, kind: input, shape index: {}]
  %s3 = inlined_call_operand.vmem [shape: bf16[64,256], index: 3, kind: input, shape index: {}]
  %s4 = inlined_call_operand.vmem [shape: f32[1,256], index: 4, kind: input, shape index: {}]
  %s5 = inlined_call_operand.hbm [shape: bf16[256,128], index: 5, kind: input, shape index: {}]
  %s6 = inlined_call_operand.vmem [shape: f32[1,128], index: 6, kind: input, shape index: {}]
  %s7 = inlined_call_operand.hbm [shape: f32[128,128], index: 7, kind: output, shape index: {}]
  %s8 = sld [smem:[#allocation0]]
  $region42: #{tpu_custom_call.1} parent=0
    _
  %s10 = ssub.s32 1, %s8
  %s11 = scalar_select 0, %s10, %s8
  $region1: #{tpu_custom_call.1} parent=0
    #allocation2 [shape = 'u8[65536]{0}', space=vmem, size = 0x10000, scoped, tag = 'input window, operand 5, single buffered']
    #allocation3 [shape = 's32[1]{0}', space=sflag, size = 0x4, scoped, tag = 'scoped memory for tpu_custom_call.1']
    #allocation4 [shape = 's32[1]{0}', space=sflag, size = 0x4, scoped, tag = 'scoped memory for tpu_custom_call.1']
    #allocation5 [shape = 'u8[65536]{0}', space=vmem, size = 0x10000, scoped, tag = 'output window, operand 0, single buffered']
    %12 = vsyncpa [#allocation3], 0
    %13 = vsyncpa [#allocation4], 0
    // Predicated region
    $region2: #{tpu_custom_call.1} parent=1 // pred_check
      _
    $region3: #{tpu_custom_call.1} parent=1 // pred_check_branch
      %15 = sbr.rel (0) target = $region5
    $region4: #{tpu_custom_call.1} parent=1 // pred_region
      _
    $region5: #{tpu_custom_call.1} parent=1 // pred_fallthru
      _
    // Predicated region
    $region6: #{tpu_custom_call.1} parent=1 // pred_check
      _
    $region7: #{tpu_custom_call.1} parent=1 // pred_check_branch
      %17 = sbr.rel (0) target = $region9
    $region8: #{tpu_custom_call.1} parent=1 // pred_region
      _
    $region9: #{tpu_custom_call.1} parent=1 // pred_fallthru
      _
    // Predicated region
    $region10: #{tpu_custom_call.1} parent=1 // pred_check
      _
    $region11: #{tpu_custom_call.1} parent=1 // pred_check_branch
      %19 = sbr.rel (0) target = $region13
    $region12: #{tpu_custom_call.1} parent=1 // pred_region
      _
    $region13: #{tpu_custom_call.1} parent=1 // pred_fallthru
      _
    // Predicated region
    $region14: #{tpu_custom_call.1} parent=1 // pred_check
      _
    $region15: #{tpu_custom_call.1} parent=1 // pred_check_branch
      %21 = sbr.rel (0) target = $region17
    $region16: #{tpu_custom_call.1} parent=1 // pred_region
      _
    $region17: #{tpu_custom_call.1} parent=1 // pred_fallthru
      _
    // Predicated region
    $region18: #{tpu_custom_call.1} parent=1 // pred_check
      _
    $region19: #{tpu_custom_call.1} parent=1 // pred_check_branch
      %23 = sbr.rel (0) target = $region21
    $region20: #{tpu_custom_call.1} parent=1 // pred_region
      _
    $region21: #{tpu_custom_call.1} parent=1 // pred_fallthru
      _
    // Predicated region
    $region22: #{tpu_custom_call.1} parent=1 // pred_check
      _
    $region23: #{tpu_custom_call.1} parent=1 // pred_check_branch
      %25 = sbr.rel (0) target = $region25
    $region24: #{tpu_custom_call.1} parent=1 // pred_region
      %s27 = ssub.s32 2048, 2048
      %28 = vsyncadd [#allocation3], %s27
      %s29 = sshll.u32 [#allocation2], 4
      %s30 = int_to_ptr.vmem [resolvable:$true] %s29
      %35 = dma.hbm_to_vmem [thread:$0]  %s5, 2048, %s30, [#allocation3], 64, 64, 4
    $region25: #{tpu_custom_call.1} parent=1 // pred_fallthru
      _
    // Predicated region
    $region26: #{tpu_custom_call.1} parent=1 // pred_check
      _
    $region27: #{tpu_custom_call.1} parent=1 // pred_check_branch
      %37 = sbr.rel (0) target = $region29
    $region28: #{tpu_custom_call.1} parent=1 // pred_region
      _
    $region29: #{tpu_custom_call.1} parent=1 // pred_fallthru
      _
    // Predicated region
    $region30: #{tpu_custom_call.1} parent=1 // pred_check
      _
    $region31: #{tpu_custom_call.1} parent=1 // pred_check_branch
      %39 = sbr.rel (0) target = $region33
    $region32: #{tpu_custom_call.1} parent=1 // pred_region
      %40 = dma.done [#allocation3], 2048
    $region33: #{tpu_custom_call.1} parent=1 // pred_fallthru
      _
    %v42 = vld [vmem:[%s0] sm:$0xf]
    %v43 = vld [vmem:[%s0 + $0x4] sm:$0xf]
    %v44 = vld [vmem:[%s0 + $0x8] sm:$0xf]
    %v45 = vld [vmem:[%s0 + $0xc] sm:$0xf]
    %v46 = vld [vmem:[%s0 + $0x10] sm:$0xf]
    %v47 = vld [vmem:[%s0 + $0x14] sm:$0xf]
    %v48 = vld [vmem:[%s0 + $0x18] sm:$0xf]
    %v49 = vld [vmem:[%s0 + $0x1c] sm:$0xf]
    %v50 = vld [vmem:[%s0 + $0x20] sm:$0xf]
    %v51 = vld [vmem:[%s0 + $0x24] sm:$0xf]
    %v52 = vld [vmem:[%s0 + $0x28] sm:$0xf]
    %v53 = vld [vmem:[%s0 + $0x2c] sm:$0xf]
    %v54 = vld [vmem:[%s0 + $0x30] sm:$0xf]
    %v55 = vld [vmem:[%s0 + $0x34] sm:$0xf]
    %v56 = vld [vmem:[%s0 + $0x38] sm:$0xf]
    %v57 = vld [vmem:[%s0 + $0x3c] sm:$0xf]
    %v58 = vld [vmem:[%s1] sm:$0xf]
    %v59 = vld [vmem:[%s1 + $0x4] sm:$0xf]
    %v60 = vld [vmem:[%s2] sm:$0x1]
    %v62 = vlaneseq
    %v63 = vshrl.u32 %v62, 7
    %v64 = vsub.s32 0, %v63
    %v65 = vrot.slane %v60, %v64
    %v83 = vunpack.c.l.b16 %v42
    %v84 = vunpack.c.l.b16 %v43
    %v85 = vunpack.c.l.b16 %v44
    %v86 = vunpack.c.l.b16 %v45
    %v87 = vunpack.c.l.b16 %v46
    %v88 = vunpack.c.l.b16 %v47
    %v89 = vunpack.c.l.b16 %v48
    %v90 = vunpack.c.l.b16 %v49
    %v91 = vunpack.c.l.b16 %v50
    %v92 = vunpack.c.l.b16 %v51
    %v93 = vunpack.c.l.b16 %v52
    %v94 = vunpack.c.l.b16 %v53
    %v95 = vunpack.c.l.b16 %v54
    %v96 = vunpack.c.l.b16 %v55
    %v97 = vunpack.c.l.b16 %v56
    %v98 = vunpack.c.l.b16 %v57
    %v99 = vpack.c.b16 %v84, %v83
    %v100 = vpack.c.b16 %v86, %v85
    %v101 = vpack.c.b16 %v88, %v87
    %v102 = vpack.c.b16 %v90, %v89
    %v103 = vpack.c.b16 %v92, %v91
    %v104 = vpack.c.b16 %v94, %v93
    %v105 = vpack.c.b16 %v96, %v95
    %v106 = vpack.c.b16 %v98, %v97
    %v109 = vunpack.c.l.b16 %v58
    %v110 = vunpack.c.l.b16 %v59
    %v111 = vpack.c.b16 %v110, %v109
    %vm113 = vcmask 130048
    %v115 = vsel %vm113, %v99, 0
    %v118 = vsel %vm113, %v100, 0
    %v121 = vsel %vm113, %v101, 0
    %v124 = vsel %vm113, %v102, 0
    %v127 = vsel %vm113, %v103, 0
    %v130 = vsel %vm113, %v104, 0
    %v133 = vsel %vm113, %v105, 0
    %v136 = vsel %vm113, %v106, 0
    %138 = vmatprep.subr.bf16.mxu0 0
    %139 = vmatpush1.bf16.msra.mxu0 %v111
    %140 = vmatprep.subr.bf16.mxu0 0
    %141 = vmatpush1.bf16.msra.mxu0 0
    %142 = vmatprep.subr.bf16.mxu0 0
    %143 = vmatpush1.bf16.msra.mxu0 0
    %144 = vmatprep.subr.bf16.mxu0 0
    %145 = vmatpush1.bf16.msra.mxu0 0
    %146 = vmatprep.subr.bf16.mxu0 0
    %147 = vmatpush1.bf16.msra.mxu0 0
    %148 = vmatprep.subr.bf16.mxu0 0
    %149 = vmatpush1.bf16.msra.mxu0 0
    %150 = vmatprep.subr.bf16.mxu0 0
    %151 = vmatpush1.bf16.msra.mxu0 0
    %152 = vmatprep.subr.bf16.mxu0 0
    %153 = vmatpush1.bf16.msra.mxu0 0
    %154 = vmatprep.subr.bf16.mxu0 0
    %155 = vmatpush1.bf16.msra.mxu0 0
    %156 = vmatprep.subr.bf16.mxu0 0
    %157 = vmatpush1.bf16.msra.mxu0 0
    %158 = vmatprep.subr.bf16.mxu0 0
    %159 = vmatpush1.bf16.msra.mxu0 0
    %160 = vmatprep.subr.bf16.mxu0 0
    %161 = vmatpush1.bf16.msra.mxu0 0
    %162 = vmatprep.subr.bf16.mxu0 0
    %163 = vmatpush1.bf16.msra.mxu0 0
    %164 = vmatprep.subr.bf16.mxu0 0
    %165 = vmatpush1.bf16.msra.mxu0 0
    %166 = vmatprep.subr.bf16.mxu0 0
    %167 = vmatpush1.bf16.msra.mxu0 0
    %168 = vmatprep.subr.bf16.mxu0 0
    %169 = vmatpush1.bf16.msra.mxu0 0
    %170 = vmatprep.mubr.bf16.mxu0 0
    %171 = vmatmul.mubr.bf16.gmra.mrb[0].mxu0 %v115
    %v172 = vpop.f32.mrb[0].mxu0
    %v173 = vadd.f32 %v65, %v172
    %v174 = vpop.f32.mrb[0].mxu0
    %v175 = vpop.f32.mrb[0].mxu0
    %v176 = vadd.f32 %v65, %v175
    %v177 = vpop.f32.mrb[0].mxu0
    %178 = vmatprep.mubr.bf16.mxu0 0
    %179 = vmatmul.mubr.bf16.gmra.mrb[0].mxu0 %v118
    %v180 = vpop.f32.mrb[0].mxu0
    %v181 = vadd.f32 %v65, %v180
    %v182 = vpop.f32.mrb[0].mxu0
    %v183 = vpop.f32.mrb[0].mxu0
    %v184 = vadd.f32 %v65, %v183
    %v185 = vpop.f32.mrb[0].mxu0
    %186 = vmatprep.mubr.bf16.mxu0 0
    %187 = vmatmul.mubr.bf16.gmra.mrb[0].mxu0 %v121
    %v188 = vpop.f32.mrb[0].mxu0
    %v189 = vadd.f32 %v65, %v188
    %v190 = vpop.f32.mrb[0].mxu0
    %v191 = vpop.f32.mrb[0].mxu0
    %v192 = vadd.f32 %v65, %v191
    %v193 = vpop.f32.mrb[0].mxu0
    %194 = vmatprep.mubr.bf16.mxu0 0
    %195 = vmatmul.mubr.bf16.gmra.mrb[0].mxu0 %v124
    %v196 = vpop.f32.mrb[0].mxu0
    %v197 = vadd.f32 %v65, %v196
    %v198 = vpop.f32.mrb[0].mxu0
    %v199 = vpop.f32.mrb[0].mxu0
    %v200 = vadd.f32 %v65, %v199
    %v201 = vpop.f32.mrb[0].mxu0
    %202 = vmatprep.mubr.bf16.mxu0 0
    %203 = vmatmul.mubr.bf16.gmra.mrb[0].mxu0 %v127
    %v204 = vpop.f32.mrb[0].mxu0
    %v205 = vadd.f32 %v65, %v204
    %v206 = vpop.f32.mrb[0].mxu0
    %v207 = vpop.f32.mrb[0].mxu0
    %v208 = vadd.f32 %v65, %v207
    %v209 = vpop.f32.mrb[0].mxu0
    %210 = vmatprep.mubr.bf16.mxu0 0
    %211 = vmatmul.mubr.bf16.gmra.mrb[0].mxu0 %v130
    %v212 = vpop.f32.mrb[0].mxu0
    %v213 = vadd.f32 %v65, %v212
    %v214 = vpop.f32.mrb[0].mxu0
    %v215 = vpop.f32.mrb[0].mxu0
    %v216 = vadd.f32 %v65, %v215
    %v217 = vpop.f32.mrb[0].mxu0
    %218 = vmatprep.mubr.bf16.mxu0 0
    %219 = vmatmul.mubr.bf16.gmra.mrb[0].mxu0 %v133
    %v220 = vpop.f32.mrb[0].mxu0
    %v221 = vadd.f32 %v65, %v220
    %v222 = vpop.f32.mrb[0].mxu0
    %v223 = vpop.f32.mrb[0].mxu0
    %v224 = vadd.f32 %v65, %v223
    %v225 = vpop.f32.mrb[0].mxu0
    %226 = vmatprep.mubr.bf16.mxu0 0
    %227 = vmatmul.mubr.bf16.gmra.mrb[0].mxu0 %v136
    %v228 = vpop.f32.mrb[0].mxu0
    %v229 = vadd.f32 %v65, %v228
    %v230 = vpop.f32.mrb[0].mxu0
    %v231 = vpop.f32.mrb[0].mxu0
    %v232 = vadd.f32 %v65, %v231
    %v233 = vpop.f32.mrb[0].mxu0
    %234 = vdwg.mxu0
    %v235 = vmax.f32 %v173, 0.0
    %v236 = vmax.f32 %v176, 0.0
    %v237 = vmax.f32 %v181, 0.0
    %v238 = vmax.f32 %v184, 0.0
    %v239 = vmax.f32 %v189, 0.0
    %v240 = vmax.f32 %v192, 0.0
    %v241 = vmax.f32 %v197, 0.0
    %v242 = vmax.f32 %v200, 0.0
    %v243 = vmax.f32 %v205, 0.0
    %v244 = vmax.f32 %v208, 0.0
    %v245 = vmax.f32 %v213, 0.0
    %v246 = vmax.f32 %v216, 0.0
    %v247 = vmax.f32 %v221, 0.0
    %v248 = vmax.f32 %v224, 0.0
    %v249 = vmax.f32 %v229, 0.0
    %v250 = vmax.f32 %v232, 0.0
    %v251 = vpack.c.bf16 %v236, %v235
    %v252 = vpack.c.bf16 %v238, %v237
    %v253 = vpack.c.bf16 %v240, %v239
    %v254 = vpack.c.bf16 %v242, %v241
    %v255 = vpack.c.bf16 %v244, %v243
    %v256 = vpack.c.bf16 %v246, %v245
    %v257 = vpack.c.bf16 %v248, %v247
    %v258 = vpack.c.bf16 %v250, %v249
    %v259 = vld [vmem:[%s3] sm:$0xff]
    %v260 = vld [vmem:[%s3 + $0x8] sm:$0xff]
    %v261 = vld [vmem:[%s3 + $0x10] sm:$0xff]
    %v262 = vld [vmem:[%s3 + $0x18] sm:$0xff]
    %v263 = vld [vmem:[%s3 + $0x20] sm:$0xff]
    %v264 = vld [vmem:[%s3 + $0x28] sm:$0xff]
    %v265 = vld [vmem:[%s3 + $0x30] sm:$0xff]
    %v266 = vld [vmem:[%s3 + $0x38] sm:$0xff]
    %v267 = vld [vmem:[%s4] sm:$0x3]
    %v269 = vlaneseq
    %v270 = vshrl.u32 %v269, 7
    %v271 = vsub.s32 0, %v270
    %v272 = vrot.slane %v267, %v271
    %v273 = vlaneseq
    %v274 = vshrl.u32 %v273, 7
    %v275 = vsub.s32 1, %v274
    %v276 = vrot.slane %v267, %v275
    %v287 = vunpack.c.l.b16 %v259
    %v288 = vunpack.c.h.b16 %v259
    %v289 = vunpack.c.l.b16 %v260
    %v290 = vunpack.c.h.b16 %v260
    %v291 = vunpack.c.l.b16 %v261
    %v292 = vunpack.c.h.b16 %v261
    %v293 = vunpack.c.l.b16 %v262
    %v294 = vunpack.c.h.b16 %v262
    %v295 = vunpack.c.l.b16 %v263
    %v296 = vunpack.c.h.b16 %v263
    %v297 = vunpack.c.l.b16 %v264
    %v298 = vunpack.c.h.b16 %v264
    %v299 = vunpack.c.l.b16 %v265
    %v300 = vunpack.c.h.b16 %v265
    %v301 = vunpack.c.l.b16 %v266
    %v302 = vunpack.c.h.b16 %v266
    %v303 = vpack.c.b16 %v289, %v287
    %v304 = vpack.c.b16 %v290, %v288
    %v305 = vpack.c.b16 %v293, %v291
    %v306 = vpack.c.b16 %v294, %v292
    %v307 = vpack.c.b16 %v297, %v295
    %v308 = vpack.c.b16 %v298, %v296
    %v309 = vpack.c.b16 %v301, %v299
    %v310 = vpack.c.b16 %v302, %v300
    %vm319 = vcmask 523264
    %v321 = vsel %vm319, %v251, 0
    %v324 = vsel %vm319, %v252, 0
    %v327 = vsel %vm319, %v253, 0
    %v330 = vsel %vm319, %v254, 0
    %v333 = vsel %vm319, %v255, 0
    %v336 = vsel %vm319, %v256, 0
    %v339 = vsel %vm319, %v257, 0
    %v342 = vsel %vm319, %v258, 0
    %344 = vmatprep.subr.bf16.mxu0 %v304
    %345 = vmatpush1.bf16.msra.mxu0 %v303
    %346 = vmatprep.subr.bf16.mxu0 %v306
    %347 = vmatpush1.bf16.msra.mxu0 %v305
    %348 = vmatprep.subr.bf16.mxu0 %v308
    %349 = vmatpush1.bf16.msra.mxu0 %v307
    %350 = vmatprep.subr.bf16.mxu0 %v310
    %351 = vmatpush1.bf16.msra.mxu0 %v309
    %352 = vmatprep.subr.bf16.mxu0 0
    %353 = vmatpush1.bf16.msra.mxu0 0
    %354 = vmatprep.subr.bf16.mxu0 0
    %355 = vmatpush1.bf16.msra.mxu0 0
    %356 = vmatprep.subr.bf16.mxu0 0
    %357 = vmatpush1.bf16.msra.mxu0 0
    %358 = vmatprep.subr.bf16.mxu0 0
    %359 = vmatpush1.bf16.msra.mxu0 0
    %360 = vmatprep.subr.bf16.mxu0 0
    %361 = vmatpush1.bf16.msra.mxu0 0
    %362 = vmatprep.subr.bf16.mxu0 0
    %363 = vmatpush1.bf16.msra.mxu0 0
    %364 = vmatprep.subr.bf16.mxu0 0
    %365 = vmatpush1.bf16.msra.mxu0 0
    %366 = vmatprep.subr.bf16.mxu0 0
    %367 = vmatpush1.bf16.msra.mxu0 0
    %368 = vmatprep.subr.bf16.mxu0 0
    %369 = vmatpush1.bf16.msra.mxu0 0
    %370 = vmatprep.subr.bf16.mxu0 0
    %371 = vmatpush1.bf16.msra.mxu0 0
    %372 = vmatprep.subr.bf16.mxu0 0
    %373 = vmatpush1.bf16.msra.mxu0 0
    %374 = vmatprep.subr.bf16.mxu0 0
    %375 = vmatpush1.bf16.msra.mxu0 0
    %376 = vmatprep.mubr.bf16.mxu0 0
    %377 = vmatmul.mubr.bf16.gmra.mrb[0].mxu0 %v321
    %v378 = vpop.f32.mrb[0].mxu0
    %v379 = vadd.f32 %v272, %v378
    %v380 = vpop.f32.mrb[0].mxu0
    %v381 = vadd.f32 %v276, %v380
    %v382 = vpop.f32.mrb[0].mxu0
    %v383 = vadd.f32 %v272, %v382
    %v384 = vpop.f32.mrb[0].mxu0
    %v385 = vadd.f32 %v276, %v384
    %386 = vmatprep.mubr.bf16.mxu0 0
    %387 = vmatmul.mubr.bf16.gmra.mrb[0].mxu0 %v324
    %v388 = vpop.f32.mrb[0].mxu0
    %v389 = vadd.f32 %v272, %v388
    %v390 = vpop.f32.mrb[0].mxu0
    %v391 = vadd.f32 %v276, %v390
    %v392 = vpop.f32.mrb[0].mxu0
    %v393 = vadd.f32 %v272, %v392
    %v394 = vpop.f32.mrb[0].mxu0
    %v395 = vadd.f32 %v276, %v394
    %396 = vmatprep.mubr.bf16.mxu0 0
    %397 = vmatmul.mubr.bf16.gmra.mrb[0].mxu0 %v327
    %v398 = vpop.f32.mrb[0].mxu0
    %v399 = vadd.f32 %v272, %v398
    %v400 = vpop.f32.mrb[0].mxu0
    %v401 = vadd.f32 %v276, %v400
    %v402 = vpop.f32.mrb[0].mxu0
    %v403 = vadd.f32 %v272, %v402
    %v404 = vpop.f32.mrb[0].mxu0
    %v405 = vadd.f32 %v276, %v404
    %406 = vmatprep.mubr.bf16.mxu0 0
    %407 = vmatmul.mubr.bf16.gmra.mrb[0].mxu0 %v330
    %v408 = vpop.f32.mrb[0].mxu0
    %v409 = vadd.f32 %v272, %v408
    %v410 = vpop.f32.mrb[0].mxu0
    %v411 = vadd.f32 %v276, %v410
    %v412 = vpop.f32.mrb[0].mxu0
    %v413 = vadd.f32 %v272, %v412
    %v414 = vpop.f32.mrb[0].mxu0
    %v415 = vadd.f32 %v276, %v414
    %416 = vmatprep.mubr.bf16.mxu0 0
    %417 = vmatmul.mubr.bf16.gmra.mrb[0].mxu0 %v333
    %v418 = vpop.f32.mrb[0].mxu0
    %v419 = vadd.f32 %v272, %v418
    %v420 = vpop.f32.mrb[0].mxu0
    %v421 = vadd.f32 %v276, %v420
    %v422 = vpop.f32.mrb[0].mxu0
    %v423 = vadd.f32 %v272, %v422
    %v424 = vpop.f32.mrb[0].mxu0
    %v425 = vadd.f32 %v276, %v424
    %426 = vmatprep.mubr.bf16.mxu0 0
    %427 = vmatmul.mubr.bf16.gmra.mrb[0].mxu0 %v336
    %v428 = vpop.f32.mrb[0].mxu0
    %v429 = vadd.f32 %v272, %v428
    %v430 = vpop.f32.mrb[0].mxu0
    %v431 = vadd.f32 %v276, %v430
    %v432 = vpop.f32.mrb[0].mxu0
    %v433 = vadd.f32 %v272, %v432
    %v434 = vpop.f32.mrb[0].mxu0
    %v435 = vadd.f32 %v276, %v434
    %436 = vmatprep.mubr.bf16.mxu0 0
    %437 = vmatmul.mubr.bf16.gmra.mrb[0].mxu0 %v339
    %v438 = vpop.f32.mrb[0].mxu0
    %v439 = vadd.f32 %v272, %v438
    %v440 = vpop.f32.mrb[0].mxu0
    %v441 = vadd.f32 %v276, %v440
    %v442 = vpop.f32.mrb[0].mxu0
    %v443 = vadd.f32 %v272, %v442
    %v444 = vpop.f32.mrb[0].mxu0
    %v445 = vadd.f32 %v276, %v444
    %446 = vmatprep.mubr.bf16.mxu0 0
    %447 = vmatmul.mubr.bf16.gmra.mrb[0].mxu0 %v342
    %v448 = vpop.f32.mrb[0].mxu0
    %v449 = vadd.f32 %v272, %v448
    %v450 = vpop.f32.mrb[0].mxu0
    %v451 = vadd.f32 %v276, %v450
    %v452 = vpop.f32.mrb[0].mxu0
    %v453 = vadd.f32 %v272, %v452
    %v454 = vpop.f32.mrb[0].mxu0
    %v455 = vadd.f32 %v276, %v454
    %456 = vdwg.mxu0
    %v457 = vmax.f32 %v379, 0.0
    %v458 = vmax.f32 %v381, 0.0
    %v459 = vmax.f32 %v383, 0.0
    %v460 = vmax.f32 %v385, 0.0
    %v461 = vmax.f32 %v389, 0.0
    %v462 = vmax.f32 %v391, 0.0
    %v463 = vmax.f32 %v393, 0.0
    %v464 = vmax.f32 %v395, 0.0
    %v465 = vmax.f32 %v399, 0.0
    %v466 = vmax.f32 %v401, 0.0
    %v467 = vmax.f32 %v403, 0.0
    %v468 = vmax.f32 %v405, 0.0
    %v469 = vmax.f32 %v409, 0.0
    %v470 = vmax.f32 %v411, 0.0
    %v471 = vmax.f32 %v413, 0.0
    %v472 = vmax.f32 %v415, 0.0
    %v473 = vmax.f32 %v419, 0.0
    %v474 = vmax.f32 %v421, 0.0
    %v475 = vmax.f32 %v423, 0.0
    %v476 = vmax.f32 %v425, 0.0
    %v477 = vmax.f32 %v429, 0.0
    %v478 = vmax.f32 %v431, 0.0
    %v479 = vmax.f32 %v433, 0.0
    %v480 = vmax.f32 %v435, 0.0
    %v481 = vmax.f32 %v439, 0.0
    %v482 = vmax.f32 %v441, 0.0
    %v483 = vmax.f32 %v443, 0.0
    %v484 = vmax.f32 %v445, 0.0
    %v485 = vmax.f32 %v449, 0.0
    %v486 = vmax.f32 %v451, 0.0
    %v487 = vmax.f32 %v453, 0.0
    %v488 = vmax.f32 %v455, 0.0
    %v489 = vpack.c.bf16 %v459, %v457
    %v490 = vpack.c.bf16 %v460, %v458
    %v491 = vpack.c.bf16 %v463, %v461
    %v492 = vpack.c.bf16 %v464, %v462
    %v493 = vpack.c.bf16 %v467, %v465
    %v494 = vpack.c.bf16 %v468, %v466
    %v495 = vpack.c.bf16 %v471, %v469
    %v496 = vpack.c.bf16 %v472, %v470
    %v497 = vpack.c.bf16 %v475, %v473
    %v498 = vpack.c.bf16 %v476, %v474
    %v499 = vpack.c.bf16 %v479, %v477
    %v500 = vpack.c.bf16 %v480, %v478
    %v501 = vpack.c.bf16 %v483, %v481
    %v502 = vpack.c.bf16 %v484, %v482
    %v503 = vpack.c.bf16 %v487, %v485
    %v504 = vpack.c.bf16 %v488, %v486
    %v505 = vld [vmem:[#allocation2] sm:$0xf]
    %v506 = vld [vmem:[#allocation2 + $0x4] sm:$0xf]
    %v507 = vld [vmem:[#allocation2 + $0x8] sm:$0xf]
    %v508 = vld [vmem:[#allocation2 + $0xc] sm:$0xf]
    %v509 = vld [vmem:[#allocation2 + $0x10] sm:$0xf]
    %v510 = vld [vmem:[#allocation2 + $0x14] sm:$0xf]
    %v511 = vld [vmem:[#allocation2 + $0x18] sm:$0xf]
    %v512 = vld [vmem:[#allocation2 + $0x1c] sm:$0xf]
    %v513 = vld [vmem:[#allocation2 + $0x20] sm:$0xf]
    %v514 = vld [vmem:[#allocation2 + $0x24] sm:$0xf]
    %v515 = vld [vmem:[#allocation2 + $0x28] sm:$0xf]
    %v516 = vld [vmem:[#allocation2 + $0x2c] sm:$0xf]
    %v517 = vld [vmem:[#allocation2 + $0x30] sm:$0xf]
    %v518 = vld [vmem:[#allocation2 + $0x34] sm:$0xf]
    %v519 = vld [vmem:[#allocation2 + $0x38] sm:$0xf]
    %v520 = vld [vmem:[#allocation2 + $0x3c] sm:$0xf]
    %v521 = vld [vmem:[#allocation2 + $0x40] sm:$0xf]
    %v522 = vld [vmem:[#allocation2 + $0x44] sm:$0xf]
    %v523 = vld [vmem:[#allocation2 + $0x48] sm:$0xf]
    %v524 = vld [vmem:[#allocation2 + $0x4c] sm:$0xf]
    %v525 = vld [vmem:[#allocation2 + $0x50] sm:$0xf]
    %v526 = vld [vmem:[#allocation2 + $0x54] sm:$0xf]
    %v527 = vld [vmem:[#allocation2 + $0x58] sm:$0xf]
    %v528 = vld [vmem:[#allocation2 + $0x5c] sm:$0xf]
    %v529 = vld [vmem:[#allocation2 + $0x60] sm:$0xf]
    %v530 = vld [vmem:[#allocation2 + $0x64] sm:$0xf]
    %v531 = vld [vmem:[#allocation2 + $0x68] sm:$0xf]
    %v532 = vld [vmem:[#allocation2 + $0x6c] sm:$0xf]
    %v533 = vld [vmem:[#allocation2 + $0x70] sm:$0xf]
    %v534 = vld [vmem:[#allocation2 + $0x74] sm:$0xf]
    %v535 = vld [vmem:[#allocation2 + $0x78] sm:$0xf]
    %v536 = vld [vmem:[#allocation2 + $0x7c] sm:$0xf]
    %v537 = vld [vmem:[%s6] sm:$0x1]
    %v539 = vlaneseq
    %v540 = vshrl.u32 %v539, 7
    %v541 = vsub.s32 0, %v540
    %v542 = vrot.slane %v537, %v541
    %v576 = vunpack.c.l.b16 %v505
    %v577 = vunpack.c.l.b16 %v506
    %v578 = vunpack.c.l.b16 %v507
    %v579 = vunpack.c.l.b16 %v508
    %v580 = vunpack.c.l.b16 %v509
    %v581 = vunpack.c.l.b16 %v510
    %v582 = vunpack.c.l.b16 %v511
    %v583 = vunpack.c.l.b16 %v512
    %v584 = vunpack.c.l.b16 %v513
    %v585 = vunpack.c.l.b16 %v514
    %v586 = vunpack.c.l.b16 %v515
    %v587 = vunpack.c.l.b16 %v516
    %v588 = vunpack.c.l.b16 %v517
    %v589 = vunpack.c.l.b16 %v518
    %v590 = vunpack.c.l.b16 %v519
    %v591 = vunpack.c.l.b16 %v520
    %v592 = vunpack.c.l.b16 %v521
    %v593 = vunpack.c.l.b16 %v522
    %v594 = vunpack.c.l.b16 %v523
    %v595 = vunpack.c.l.b16 %v524
    %v596 = vunpack.c.l.b16 %v525
    %v597 = vunpack.c.l.b16 %v526
    %v598 = vunpack.c.l.b16 %v527
    %v599 = vunpack.c.l.b16 %v528
    %v600 = vunpack.c.l.b16 %v529
    %v601 = vunpack.c.l.b16 %v530
    %v602 = vunpack.c.l.b16 %v531
    %v603 = vunpack.c.l.b16 %v532
    %v604 = vunpack.c.l.b16 %v533
    %v605 = vunpack.c.l.b16 %v534
    %v606 = vunpack.c.l.b16 %v535
    %v607 = vunpack.c.l.b16 %v536
    %v608 = vpack.c.b16 %v577, %v576
    %v609 = vpack.c.b16 %v579, %v578
    %v610 = vpack.c.b16 %v581, %v580
    %v611 = vpack.c.b16 %v583, %v582
    %v612 = vpack.c.b16 %v585, %v584
    %v613 = vpack.c.b16 %v587, %v586
    %v614 = vpack.c.b16 %v589, %v588
    %v615 = vpack.c.b16 %v591, %v590
    %v616 = vpack.c.b16 %v593, %v592
    %v617 = vpack.c.b16 %v595, %v594
    %v618 = vpack.c.b16 %v597, %v596
    %v619 = vpack.c.b16 %v599, %v598
    %v620 = vpack.c.b16 %v601, %v600
    %v621 = vpack.c.b16 %v603, %v602
    %v622 = vpack.c.b16 %v605, %v604
    %v623 = vpack.c.b16 %v607, %v606
    %640 = vmatprep.subr.bf16.mxu0 0
    %641 = vmatpush1.bf16.msra.mxu0 %v608
    %642 = vmatprep.subr.bf16.mxu0 0
    %643 = vmatpush1.bf16.msra.mxu0 %v609
    %644 = vmatprep.subr.bf16.mxu0 0
    %645 = vmatpush1.bf16.msra.mxu0 %v610
    %646 = vmatprep.subr.bf16.mxu0 0
    %647 = vmatpush1.bf16.msra.mxu0 %v611
    %648 = vmatprep.subr.bf16.mxu0 0
    %649 = vmatpush1.bf16.msra.mxu0 %v612
    %650 = vmatprep.subr.bf16.mxu0 0
    %651 = vmatpush1.bf16.msra.mxu0 %v613
    %652 = vmatprep.subr.bf16.mxu0 0
    %653 = vmatpush1.bf16.msra.mxu0 %v614
    %654 = vmatprep.subr.bf16.mxu0 0
    %655 = vmatpush1.bf16.msra.mxu0 %v615
    %656 = vmatprep.subr.bf16.mxu0 0
    %657 = vmatpush1.bf16.msra.mxu0 %v616
    %658 = vmatprep.subr.bf16.mxu0 0
    %659 = vmatpush1.bf16.msra.mxu0 %v617
    %660 = vmatprep.subr.bf16.mxu0 0
    %661 = vmatpush1.bf16.msra.mxu0 %v618
    %662 = vmatprep.subr.bf16.mxu0 0
    %663 = vmatpush1.bf16.msra.mxu0 %v619
    %664 = vmatprep.subr.bf16.mxu0 0
    %665 = vmatpush1.bf16.msra.mxu0 %v620
    %666 = vmatprep.subr.bf16.mxu0 0
    %667 = vmatpush1.bf16.msra.mxu0 %v621
    %668 = vmatprep.subr.bf16.mxu0 0
    %669 = vmatpush1.bf16.msra.mxu0 %v622
    %670 = vmatprep.subr.bf16.mxu0 0
    %671 = vmatpush1.bf16.msra.mxu0 %v623
    %672 = vmatprep.mubr.bf16.mxu0 %v490
    %673 = vmatmul.mubr.bf16.gmra.mrb[0].mxu0 %v489
    %v674 = vpop.f32.mrb[0].mxu0
    %v675 = vadd.f32 %v542, %v674
    %v676 = vpop.f32.mrb[0].mxu0
    %v677 = vpop.f32.mrb[0].mxu0
    %v678 = vadd.f32 %v542, %v677
    %v679 = vpop.f32.mrb[0].mxu0
    %680 = vmatprep.mubr.bf16.mxu0 %v492
    %681 = vmatmul.mubr.bf16.gmra.mrb[0].mxu0 %v491
    %v682 = vpop.f32.mrb[0].mxu0
    %v683 = vadd.f32 %v542, %v682
    %v684 = vpop.f32.mrb[0].mxu0
    %v685 = vpop.f32.mrb[0].mxu0
    %v686 = vadd.f32 %v542, %v685
    %v687 = vpop.f32.mrb[0].mxu0
    %688 = vmatprep.mubr.bf16.mxu0 %v494
    %689 = vmatmul.mubr.bf16.gmra.mrb[0].mxu0 %v493
    %v690 = vpop.f32.mrb[0].mxu0
    %v691 = vadd.f32 %v542, %v690
    %v692 = vpop.f32.mrb[0].mxu0
    %v693 = vpop.f32.mrb[0].mxu0
    %v694 = vadd.f32 %v542, %v693
    %v695 = vpop.f32.mrb[0].mxu0
    %696 = vmatprep.mubr.bf16.mxu0 %v496
    %697 = vmatmul.mubr.bf16.gmra.mrb[0].mxu0 %v495
    %v698 = vpop.f32.mrb[0].mxu0
    %v699 = vadd.f32 %v542, %v698
    %v700 = vpop.f32.mrb[0].mxu0
    %v701 = vpop.f32.mrb[0].mxu0
    %v702 = vadd.f32 %v542, %v701
    %v703 = vpop.f32.mrb[0].mxu0
    %704 = vmatprep.mubr.bf16.mxu0 %v498
    %705 = vmatmul.mubr.bf16.gmra.mrb[0].mxu0 %v497
    %v706 = vpop.f32.mrb[0].mxu0
    %v707 = vadd.f32 %v542, %v706
    %v708 = vpop.f32.mrb[0].mxu0
    %v709 = vpop.f32.mrb[0].mxu0
    %v710 = vadd.f32 %v542, %v709
    %v711 = vpop.f32.mrb[0].mxu0
    %712 = vmatprep.mubr.bf16.mxu0 %v500
    %713 = vmatmul.mubr.bf16.gmra.mrb[0].mxu0 %v499
    %v714 = vpop.f32.mrb[0].mxu0
    %v715 = vadd.f32 %v542, %v714
    %v716 = vpop.f32.mrb[0].mxu0
    %v717 = vpop.f32.mrb[0].mxu0
    %v718 = vadd.f32 %v542, %v717
    %v719 = vpop.f32.mrb[0].mxu0
    %720 = vmatprep.mubr.bf16.mxu0 %v502
    %721 = vmatmul.mubr.bf16.gmra.mrb[0].mxu0 %v501
    %v722 = vpop.f32.mrb[0].mxu0
    %v723 = vadd.f32 %v542, %v722
    %v724 = vpop.f32.mrb[0].mxu0
    %v725 = vpop.f32.mrb[0].mxu0
    %v726 = vadd.f32 %v542, %v725
    %v727 = vpop.f32.mrb[0].mxu0
    %728 = vmatprep.mubr.bf16.mxu0 %v504
    %729 = vmatmul.mubr.bf16.gmra.mrb[0].mxu0 %v503
    %v730 = vpop.f32.mrb[0].mxu0
    %v731 = vadd.f32 %v542, %v730
    %v732 = vpop.f32.mrb[0].mxu0
    %v733 = vpop.f32.mrb[0].mxu0
    %v734 = vadd.f32 %v542, %v733
    %v735 = vpop.f32.mrb[0].mxu0
    %736 = vdwg.mxu0
    %737 = vst [vmem:[#allocation5] sm:$0xff] %v675
    %738 = vst [vmem:[#allocation5 + $0x8] sm:$0xff] %v678
    %739 = vst [vmem:[#allocation5 + $0x10] sm:$0xff] %v683
    %740 = vst [vmem:[#allocation5 + $0x18] sm:$0xff] %v686
    %741 = vst [vmem:[#allocation5 + $0x20] sm:$0xff] %v691
    %742 = vst [vmem:[#allocation5 + $0x28] sm:$0xff] %v694
    %743 = vst [vmem:[#allocation5 + $0x30] sm:$0xff] %v699
    %744 = vst [vmem:[#allocation5 + $0x38] sm:$0xff] %v702
    %745 = vst [vmem:[#allocation5 + $0x40] sm:$0xff] %v707
    %746 = vst [vmem:[#allocation5 + $0x48] sm:$0xff] %v710
    %747 = vst [vmem:[#allocation5 + $0x50] sm:$0xff] %v715
    %748 = vst [vmem:[#allocation5 + $0x58] sm:$0xff] %v718
    %749 = vst [vmem:[#allocation5 + $0x60] sm:$0xff] %v723
    %750 = vst [vmem:[#allocation5 + $0x68] sm:$0xff] %v726
    %751 = vst [vmem:[#allocation5 + $0x70] sm:$0xff] %v731
    %752 = vst [vmem:[#allocation5 + $0x78] sm:$0xff] %v734
    // Predicated region
    $region34: #{tpu_custom_call.1} parent=1 // pred_check
      _
    $region35: #{tpu_custom_call.1} parent=1 // pred_check_branch
      %754 = sbr.rel (0) target = $region37
    $region36: #{tpu_custom_call.1} parent=1 // pred_region
      %s756 = ssub.s32 2048, 2048
      %757 = vsyncadd [#allocation4], %s756
      %s758 = sshll.u32 [#allocation5], 4
      %s759 = int_to_ptr.vmem [resolvable:$true] %s758
      %764 = dma.vmem_to_hbm [thread:$0]  %s759, 2048, %s7, [#allocation4], 128, 128, 8
    $region37: #{tpu_custom_call.1} parent=1 // pred_fallthru
      _
    // Predicated region
    $region38: #{tpu_custom_call.1} parent=1 // pred_check
      _
    $region39: #{tpu_custom_call.1} parent=1 // pred_check_branch
      %766 = sbr.rel (0) target = $region41
    $region40: #{tpu_custom_call.1} parent=1 // pred_region
      %767 = dma.done [#allocation4], 2048
    $region41: #{tpu_custom_call.1} parent=1 // pred_fallthru
      _
    %768 = vsyncpa [#allocation3], 1
    %769 = vsyncpa [#allocation4], 1

</llo_original>
